<compile_context>
chip_gen: v7x
topology: tpu7x:2x2x1
jax: 0.10.0
libtpu: 0.0.40
codegen_flags: <defaults>
</compile_context>

<pallas_src>
import jax
import jax.numpy as jnp
from jax.experimental import pallas as pl
from jax.experimental.pallas import tpu as pltpu


def cell_kernel(x_ref, wt_ref, mask_ref, value_ref, o_ref):
    # x_ref:     (B, K)       f32   -- VMEM-resident across all grid steps
    # wt_ref:    (K, tile_n)  f32   -- pre-transposed weight tile
    # mask_ref:  (K, tile_n)  int8  -- {0, 1}
    # value_ref: (1, tile_n)  f32   -- per-output-channel scale
    # o_ref:     (B, tile_n)  f32
    # Fused mask + per-channel scale fold: cmp + mul + select on the VPU,
    # then one MXU matmul whose output is final (no post-matmul (B,N) mul).
    w_scaled = jnp.where(mask_ref[...] != 0,
                         wt_ref[...] * value_ref[...],
                         jnp.float32(0.0))
    o_ref[...] = jnp.dot(x_ref[...], w_scaled,
                         preferred_element_type=jnp.float32).astype(o_ref.dtype)


def prepare_cell_params(weights, masks, values):
    """One-time parameter prep (run at parameter-load time, NOT per forward).

    weights: sequence of (N, K) f32 (nn.Linear layout)
    masks:   sequence of (N, K) bool
    values:  sequence of (N,)   f32
    Returns (wt, mask_i8, value_2d) with the per-cell output dims concatenated
    along the lane axis:
      wt:       (K, sum_N) f32
      mask_i8:  (K, sum_N) int8   (1 byte/elem DMA)
      value_2d: (1, sum_N) f32
    """
    wt = jnp.concatenate([jnp.asarray(w, jnp.float32).T for w in weights], axis=1)
    mask_i8 = jnp.concatenate(
        [jnp.asarray(m).T.astype(jnp.int8) for m in masks], axis=1)
    value_2d = jnp.concatenate(
        [jnp.asarray(v, jnp.float32).reshape(1, -1) for v in values], axis=1)
    return wt, mask_i8, value_2d


def cells_forward(x, wt, mask_i8, value_2d, *, tile_n=128):
    """x: (B, K) f32; prepared params from prepare_cell_params.
    Returns (B, sum_N) f32 — per-cell outputs concatenated along the last axis."""
    B, K = x.shape
    K2, Ntot = wt.shape
    assert K == K2
    if Ntot % tile_n != 0:
        tile_n = Ntot                      # fall back to a single full-N block
    grid = (Ntot // tile_n,)
    return pl.pallas_call(
        cell_kernel,
        out_shape=jax.ShapeDtypeStruct((B, Ntot), jnp.float32),
        grid=grid,
        in_specs=[
            pl.BlockSpec((B, K), lambda j: (0, 0)),        # x stays VMEM-resident
            pl.BlockSpec((K, tile_n), lambda j: (0, j)),   # weight tile
            pl.BlockSpec((K, tile_n), lambda j: (0, j)),   # mask tile (int8)
            pl.BlockSpec((1, tile_n), lambda j: (0, j)),   # value tile
        ],
        out_specs=pl.BlockSpec((B, tile_n), lambda j: (0, j)),
        compiler_params=pltpu.CompilerParams(
            dimension_semantics=("parallel",)),            # shard over v7x's 2 TCs
    )(x, wt, mask_i8, value_2d)


def cell_forward(x, weight, mask, value):
    """Single-Cell forward matching the PyTorch module (bias=False).
    x: (B, K) f32, weight: (N, K) f32, mask: (N, K) bool, value: (N,) f32."""
    wt, mask_i8, value_2d = prepare_cell_params([weight], [mask], [value])
    return cells_forward(x, wt, mask_i8, value_2d)


def _cell_ref(x, weight, mask, value):
    """Pure-JAX reference, same op order as the PyTorch module."""
    w_masked = weight * mask.astype(jnp.float32)
    out_mask = (jnp.sum(mask, axis=1) > 0).astype(jnp.float32)
    return (x @ w_masked.T) * (out_mask * value)[None, :]


if __name__ == "__main__":
    # Small shapes consistent with the module: Linear(inplanes -> planes), bias=False.
    B, inplanes, planes, num_cells = 8, 32, 32, 8   # sum_N = 256 -> two lane-dense tiles

    key = jax.random.PRNGKey(0)
    kx, key = jax.random.split(key)
    x = jax.random.normal(kx, (B, inplanes), dtype=jnp.float32)

    weights, masks, values = [], [], []
    for c in range(num_cells):
        kw, kv, km, key = jax.random.split(key, 4)
        w = jax.random.normal(kw, (planes, inplanes), jnp.float32) / jnp.sqrt(
            jnp.float32(inplanes))
        v = jax.random.normal(kv, (planes,), jnp.float32)
        # Module initializes mask to all-ones; use a sparse mask plus one fully
        # masked output channel per cell to exercise the masking path.
        m = jax.random.bernoulli(km, p=0.8, shape=(planes, inplanes))
        m = m.at[(c + 3) % planes, :].set(False)
        weights.append(w)
        masks.append(m)
        values.append(v)

    # Parameter prep happens once (load time), not per call.
    wt, mask_i8, value_2d = prepare_cell_params(weights, masks, values)

    # Batched forward: all cells in one gridded pallas_call.
    out = jax.block_until_ready(cells_forward(x, wt, mask_i8, value_2d))

    refs = [_cell_ref(x, w, m, v) for w, m, v in zip(weights, masks, values)]
    ref = jnp.concatenate(refs, axis=1)
    assert out.shape == ref.shape
    # 1e-4 tolerance: the kernel folds the per-channel scale into the weight
    # pre-matmul, which reassociates a few f32 roundings vs. the reference.
    assert jnp.allclose(out, ref, atol=1e-4, rtol=1e-4), "batched mismatch vs reference"

    # Single-cell path (exact shape semantics of the original module).
    out1 = jax.block_until_ready(cell_forward(x, weights[0], masks[0], values[0]))
    assert jnp.allclose(out1, refs[0], atol=1e-4, rtol=1e-4), "single-cell mismatch"

    print("KERNEL_OK")
</pallas_src>

<mosaic_0001>
module attributes {stable_mosaic.version = 11 : i64} {
  func.func @cell_kernel(%arg0: i32, %arg1: memref<8x32xf32, #tpu.memory_space<vmem>>, %arg2: memref<32x128xf32, #tpu.memory_space<vmem>>, %arg3: memref<32x128xi8, #tpu.memory_space<vmem>>, %arg4: memref<1x128xf32, #tpu.memory_space<vmem>>, %arg5: memref<8x128xf32, #tpu.memory_space<vmem>>) attributes {dimension_semantics = [#tpu.dimension_semantics<parallel>], iteration_bounds = array<i64: 2>, scalar_prefetch = 0 : i64, scratch_operands = 0 : i64, tpu.core_type = #tpu.core_type<tc>, window_params = [{pipeline_mode = #tpu.pipeline_mode<synchronous>, transform_indices = @transform_0, window_bounds = array<i64: 8, 32>}, {transform_indices = @transform_1, window_bounds = array<i64: 32, 128>}, {transform_indices = @transform_2, window_bounds = array<i64: 32, 128>}, {transform_indices = @transform_3, window_bounds = array<i64: 1, 128>}, {transform_indices = @transform_4, window_bounds = array<i64: 8, 128>}]} {
    %c0 = arith.constant 0 : index
    %c0_0 = arith.constant 0 : index
    %0 = vector.load %arg3[%c0, %c0_0] : memref<32x128xi8, #tpu.memory_space<vmem>>, vector<32x128xi8>
    %c0_i8 = arith.constant 0 : i8
    %1 = vector.broadcast %c0_i8 : i8 to vector<32x128xi8>
    %2 = arith.cmpi ne, %0, %1 : vector<32x128xi8>
    %c0_1 = arith.constant 0 : index
    %c0_2 = arith.constant 0 : index
    %3 = vector.load %arg2[%c0_1, %c0_2] : memref<32x128xf32, #tpu.memory_space<vmem>>, vector<32x128xf32>
    %c0_3 = arith.constant 0 : index
    %c0_4 = arith.constant 0 : index
    %4 = vector.load %arg4[%c0_3, %c0_4] : memref<1x128xf32, #tpu.memory_space<vmem>>, vector<1x128xf32>
    %5 = vector.broadcast %4 : vector<1x128xf32> to vector<32x128xf32>
    %6 = arith.mulf %3, %5 : vector<32x128xf32>
    %cst = arith.constant 0.000000e+00 : f32
    %7 = vector.broadcast %cst : f32 to vector<32x128xf32>
    %8 = arith.select %2, %6, %7 : vector<32x128xi1>, vector<32x128xf32>
    %c0_5 = arith.constant 0 : index
    %c0_6 = arith.constant 0 : index
    %9 = vector.load %arg1[%c0_5, %c0_6] : memref<8x32xf32, #tpu.memory_space<vmem>>, vector<8x32xf32>
    %cst_7 = arith.constant dense<0.000000e+00> : vector<8x128xf32>
    %10 = tpu.matmul %9, %8, %cst_7 {dimension_numbers = #tpu.dot_dimension_numbers<[1], [0], [0], [1], [0, 0, 1, 1], [], []>} : vector<8x32xf32>, vector<32x128xf32>, vector<8x128xf32> -> vector<8x128xf32>
    %c0_8 = arith.constant 0 : index
    %c0_9 = arith.constant 0 : index
    %11 = vector.load %arg5[%c0_8, %c0_9] : memref<8x128xf32, #tpu.memory_space<vmem>>, vector<8x128xf32>
    tpu.vector_store %arg5[%c0_8, %c0_9], %10 {strides = array<i32>} : memref<8x128xf32, #tpu.memory_space<vmem>>, vector<8x128xf32>,
    return
  }
  func.func @transform_0(%arg0: i32) -> (i32, i32) {
    %c0_i32 = arith.constant 0 : i32
    %c0_i32_0 = arith.constant 0 : i32
    %c0_i32_1 = arith.constant 0 : i32
    return %c0_i32, %c0_i32_0 : i32, i32
  }
  func.func @transform_1(%arg0: i32) -> (i32, i32) {
    %c0_i32 = arith.constant 0 : i32
    %c0_i32_0 = arith.constant 0 : i32
    return %c0_i32, %arg0 : i32, i32
  }
  func.func @transform_2(%arg0: i32) -> (i32, i32) {
    %c0_i32 = arith.constant 0 : i32
    %c0_i32_0 = arith.constant 0 : i32
    return %c0_i32, %arg0 : i32, i32
  }
  func.func @transform_3(%arg0: i32) -> (i32, i32) {
    %c0_i32 = arith.constant 0 : i32
    %c0_i32_0 = arith.constant 0 : i32
    return %c0_i32, %arg0 : i32, i32
  }
  func.func @transform_4(%arg0: i32) -> (i32, i32) {
    %c0_i32 = arith.constant 0 : i32
    %c0_i32_0 = arith.constant 0 : i32
    return %c0_i32, %arg0 : i32, i32
  }
}

</mosaic_0001>

<llo_original>
// kernel: tpu_custom_call.1
$region0: #{tpu_custom_call.1}
  #allocation0 [shape = 'u32[]', space=smem, size = 0x4, offset = 0x4, fixed_abs, tag = 'smem constant byte address 0x4 - core index']
  #allocation1 [shape = 'u32[144,128]{1,0:T(1,128)}', space=vmem, size = 0x12000, scoped, tag = 'internal scratch']
  %s0 = inlined_call_operand.hbm [shape: f32[8,32], index: 0, kind: input, shape index: {}]
  %s1 = inlined_call_operand.hbm [shape: f32[32,256], index: 1, kind: input, shape index: {}]
  %s2 = inlined_call_operand.hbm [shape: s8[32,256], index: 2, kind: input, shape index: {}]
  %s3 = inlined_call_operand.vmem [shape: f32[1,256], index: 3, kind: input, shape index: {}]
  %s4 = inlined_call_operand.hbm [shape: f32[8,256], index: 4, kind: output, shape index: {}]
  %s5 = sld [smem:[#allocation0]]
  $region61: #{tpu_custom_call.1} parent=0
    _
  %s7 = ssub.s32 1, %s5
  %s8 = scalar_select 0, %s7, %s5
  $region1: #{tpu_custom_call.1} parent=0
    #allocation2 [shape = 'u8[4096]{0}', space=vmem, size = 0x1000, scoped, tag = 'input window, operand 0, single buffered']
    #allocation3 [shape = 's32[2]{0}', space=sflag, size = 0x8, scoped, tag = 'scoped memory for tpu_custom_call.1']
    #allocation4 [shape = 's32[2]{0}', space=sflag, size = 0x8, scoped, tag = 'scoped memory for tpu_custom_call.1']
    #allocation5 [shape = 'u8[32768]{0}', space=vmem, size = 0x8000, scoped, tag = 'input window, operand 1']
    #allocation6 [shape = 's32[2]{0}', space=sflag, size = 0x8, scoped, tag = 'scoped memory for tpu_custom_call.1']
    #allocation7 [shape = 'u8[8192]{0}', space=vmem, size = 0x2000, scoped, tag = 'input window, operand 2']
    #allocation8 [shape = 'u8[8192]{0}', space=vmem, size = 0x2000, scoped, tag = 'output window, operand 0']
    %9 = vsyncpa [#allocation3], 0
    %10 = vsyncpa [#allocation6], 0
    %s11 = scalar_lea.sflag [#allocation6], 1
    %12 = vsyncpa %s11, 0
    %13 = vsyncpa [#allocation4], 0
    %s14 = scalar_lea.sflag [#allocation4], 1
    %15 = vsyncpa %s14, 0
    loop: start=0, step=1, limit=4
    $region2: #{tpu_custom_call.1} parent=1 // loop_pre_header
      _
    $region3: #{tpu_custom_call.1} parent=1 // loop_header
      %s17 = sphi 0, %s21
      %p18 = scmp.ge.s32.totalorder %s17, 4
      %s25 = sphi 0, %s25
      %s27 = sphi 0, %s25
      %s28 = sphi 0, %s27
      %s42 = sphi 0, %s28
      %s48 = sphi 0, %s50
      %s51 = sphi 0, %s48
      %s52 = sphi 0, %s51
      %s68 = sphi 0, %s52
      %s74 = sphi 0, %s76
      %s77 = sphi 0, %s74
      %s78 = sphi 0, %s77
      %s94 = sphi 0, %s78
      %s100 = sphi 0, %s102
      %s103 = sphi 0, %s100
      %s104 = sphi 0, %s103
      %s120 = sphi 0, %s104
      %s126 = sphi 0, %s128
      %s129 = sphi 0, %s126
      %s130 = sphi 0, %s129
      %s146 = sphi 0, %s130
    $region4: #{tpu_custom_call.1} parent=1 // loop_header_branch
      %20 = sbr.rel (%p18) target = $region8
    $region5: #{tpu_custom_call.1} parent=1 // loop_body
      %s22 = ssub.s32 %s17, 1
      %s23 = ssub.s32 %s17, 2
      %s24 = sadd.s32 %s17, 1
      %s26 = sadd.s32 %s25, 1
      %p29 = scmp.eq.s32.totalorder %s17, 1
      %p30 = scmp.ne.s32.totalorder %s25, %s27
      %p31 = scmp.eq.s32.totalorder %s17, 0
      %p32 = por %p30, %p31
      %p33 = scmp.ne.s32.totalorder %s25, %s27
      %p34 = scmp.eq.s32.totalorder %s22, 1
      %p35 = por %p33, %p34
      %p36 = scmp.ne.s32.totalorder %s27, %s28
      %p37 = scmp.eq.s32.totalorder %s22, 0
      %p38 = por %p36, %p37
      %p39 = scmp.ne.s32.totalorder %s27, %s28
      %p40 = scmp.eq.s32.totalorder %s23, 1
      %p41 = por %p39, %p40
      %p43 = scmp.ne.s32.totalorder %s28, %s42
      %p44 = scmp.eq.s32.totalorder %s23, 0
      %p45 = por %p43, %p44
      %s46 = ssub.s32 %s17, %s24
      %p47 = scmp.eq.s32.totalorder %s46, 0
      %s49 = sadd.s32 %s48, 1
      %s50 = scalar_select %p47, %s48, %s49
      %p53 = pneg %p47
      %p54 = scmp.eq.s32.totalorder %s17, 1
      %p55 = por %p53, %p54
      %p56 = scmp.ne.s32.totalorder %s48, %s51
      %p57 = scmp.eq.s32.totalorder %s17, 0
      %p58 = por %p56, %p57
      %p59 = scmp.ne.s32.totalorder %s48, %s51
      %p60 = scmp.eq.s32.totalorder %s22, 1
      %p61 = por %p59, %p60
      %p62 = scmp.ne.s32.totalorder %s51, %s52
      %p63 = scmp.eq.s32.totalorder %s22, 0
      %p64 = por %p62, %p63
      %p65 = scmp.ne.s32.totalorder %s51, %s52
      %p66 = scmp.eq.s32.totalorder %s23, 1
      %p67 = por %p65, %p66
      %p69 = scmp.ne.s32.totalorder %s52, %s68
      %p70 = scmp.eq.s32.totalorder %s23, 0
      %p71 = por %p69, %p70
      %s72 = ssub.s32 %s17, %s24
      %p73 = scmp.eq.s32.totalorder %s72, 0
      %s75 = sadd.s32 %s74, 1
      %s76 = scalar_select %p73, %s74, %s75
      %p79 = pneg %p73
      %p80 = scmp.eq.s32.totalorder %s17, 1
      %p81 = por %p79, %p80
      %p82 = scmp.ne.s32.totalorder %s74, %s77
      %p83 = scmp.eq.s32.totalorder %s17, 0
      %p84 = por %p82, %p83
      %p85 = scmp.ne.s32.totalorder %s74, %s77
      %p86 = scmp.eq.s32.totalorder %s22, 1
      %p87 = por %p85, %p86
      %p88 = scmp.ne.s32.totalorder %s77, %s78
      %p89 = scmp.eq.s32.totalorder %s22, 0
      %p90 = por %p88, %p89
      %p91 = scmp.ne.s32.totalorder %s77, %s78
      %p92 = scmp.eq.s32.totalorder %s23, 1
      %p93 = por %p91, %p92
      %p95 = scmp.ne.s32.totalorder %s78, %s94
      %p96 = scmp.eq.s32.totalorder %s23, 0
      %p97 = por %p95, %p96
      %s98 = ssub.s32 %s17, %s24
      %p99 = scmp.eq.s32.totalorder %s98, 0
      %s101 = sadd.s32 %s100, 1
      %s102 = scalar_select %p99, %s100, %s101
      %p105 = pneg %p99
      %p106 = scmp.eq.s32.totalorder %s17, 1
      %p107 = por %p105, %p106
      %p108 = scmp.ne.s32.totalorder %s100, %s103
      %p109 = scmp.eq.s32.totalorder %s17, 0
      %p110 = por %p108, %p109
      %p111 = scmp.ne.s32.totalorder %s100, %s103
      %p112 = scmp.eq.s32.totalorder %s22, 1
      %p113 = por %p111, %p112
      %p114 = scmp.ne.s32.totalorder %s103, %s104
      %p115 = scmp.eq.s32.totalorder %s22, 0
      %p116 = por %p114, %p115
      %p117 = scmp.ne.s32.totalorder %s103, %s104
      %p118 = scmp.eq.s32.totalorder %s23, 1
      %p119 = por %p117, %p118
      %p121 = scmp.ne.s32.totalorder %s104, %s120
      %p122 = scmp.eq.s32.totalorder %s23, 0
      %p123 = por %p121, %p122
      %s124 = ssub.s32 %s17, %s24
      %p125 = scmp.eq.s32.totalorder %s124, 0
      %s127 = sadd.s32 %s126, 1
      %s128 = scalar_select %p125, %s126, %s127
      %p131 = pneg %p125
      %p132 = scmp.eq.s32.totalorder %s17, 1
      %p133 = por %p131, %p132
      %p134 = scmp.ne.s32.totalorder %s126, %s129
      %p135 = scmp.eq.s32.totalorder %s17, 0
      %p136 = por %p134, %p135
      %p137 = scmp.ne.s32.totalorder %s126, %s129
      %p138 = scmp.eq.s32.totalorder %s22, 1
      %p139 = por %p137, %p138
      %p140 = scmp.ne.s32.totalorder %s129, %s130
      %p141 = scmp.eq.s32.totalorder %s22, 0
      %p142 = por %p140, %p141
      %p143 = scmp.ne.s32.totalorder %s129, %s130
      %p144 = scmp.eq.s32.totalorder %s23, 1
      %p145 = por %p143, %p144
      %p147 = scmp.ne.s32.totalorder %s130, %s146
      %p148 = scmp.eq.s32.totalorder %s23, 0
      %p149 = por %p147, %p148
      %p150 = scmp.le.s32.totalorder 1, %s17
      %p151 = scmp.lt.s32.totalorder %s17, 3
      %p152 = pnand %p150, %p151
      %p153 = pneg %p152
      // Predicated region
      $region9: #{tpu_custom_call.1} parent=5 // pred_check
        _
      $region10: #{tpu_custom_call.1} parent=5 // pred_check_branch
        %155 = sbr.rel (%p152) target = $region12
      $region11: #{tpu_custom_call.1} parent=5 // pred_region
        %s156 = ssub.s32 %s17, 1
        // Predicated region
        $region13: #{tpu_custom_call.1} parent=11 // pred_check
          %p157 = pneg %p38
        $region14: #{tpu_custom_call.1} parent=11 // pred_check_branch
          %159 = sbr.rel (%p157) target = $region16
        $region15: #{tpu_custom_call.1} parent=11 // pred_region
          %s161 = ssub.s32 128, 128
          %162 = vsyncadd [#allocation3], %s161
          %s164 = sshll.u32 [#allocation2], 4
          %s165 = int_to_ptr.vmem [resolvable:$true] %s164
          %167 = dma.hbm_to_vmem [thread:$0]  %s0, 128, %s165, [#allocation3]
        $region16: #{tpu_custom_call.1} parent=11 // pred_fallthru
          _
      $region12: #{tpu_custom_call.1} parent=5 // pred_fallthru
        _
      %p168 = scmp.lt.s32.totalorder %s17, 2
      // Predicated region
      $region17: #{tpu_custom_call.1} parent=5 // pred_check
        %p169 = pneg %p168
      $region18: #{tpu_custom_call.1} parent=5 // pred_check_branch
        %171 = sbr.rel (%p169) target = $region20
      $region19: #{tpu_custom_call.1} parent=5 // pred_region
        // Predicated region
        $region21: #{tpu_custom_call.1} parent=19 // pred_check
          %p172 = pneg %p58
        $region22: #{tpu_custom_call.1} parent=19 // pred_check_branch
          %174 = sbr.rel (%p172) target = $region24
        $region23: #{tpu_custom_call.1} parent=19 // pred_region
          %s175 = sand.u32 %s17, 1
          %s176 = scalar_lea.sflag [#allocation6], %s175
          %s177 = sand.u32 %s48, 1
          %s178 = smul.addr %s177, 32
          %s179 = scalar_lea.vmem [#allocation5], %s178
          %s181 = ssub.s32 512, 512
          %182 = vsyncadd %s176, %s181
          %s183 = smul.addr %s17, 128
          %s184 = scalar_lea.hbm %s1, %s183
          %s185 = sshll.u32 %s179, 4
          %s186 = int_to_ptr.vmem [resolvable:$true] %s185
          %191 = dma.hbm_to_vmem [thread:$0]  %s184, 512, %s186, %s176, 256, 128, 8
        $region24: #{tpu_custom_call.1} parent=19 // pred_fallthru
          _
        // Predicated region
        $region25: #{tpu_custom_call.1} parent=19 // pred_check
          %p192 = pneg %p84
        $region26: #{tpu_custom_call.1} parent=19 // pred_check_branch
          %194 = sbr.rel (%p192) target = $region28
        $region27: #{tpu_custom_call.1} parent=19 // pred_region
          %s195 = sand.u32 %s17, 1
          %s196 = scalar_lea.sflag [#allocation6], %s195
          %s197 = sand.u32 %s74, 1
          %s198 = smul.addr %s197, 8
          %s199 = scalar_lea.vmem [#allocation7], %s198
          %s201 = ssub.s32 128, 128
          %202 = vsyncadd %s196, %s201
          %s203 = smul.addr %s17, 128
          %s204 = scalar_lea.hbm %s2, %s203
          %s206 = sshll.u32 %s199, 4
          %s207 = int_to_ptr.vmem [resolvable:$true] %s206
          %209 = dma.hbm_to_vmem [thread:$0]  %s204, 128, %s207, %s196
        $region28: #{tpu_custom_call.1} parent=19 // pred_fallthru
          _
        // Predicated region
        $region29: #{tpu_custom_call.1} parent=19 // pred_check
          %p210 = pneg %p110
        $region30: #{tpu_custom_call.1} parent=19 // pred_check_branch
          %212 = sbr.rel (%p210) target = $region32
        $region31: #{tpu_custom_call.1} parent=19 // pred_region
          %p213 = scmp.lt.s32.totalorder %s17, 1
          %s214 = scalar_select %p213, %s17, 1
          %s215 = scalar_lea.vmem %s3, %s214
        $region32: #{tpu_custom_call.1} parent=19 // pred_fallthru
          _
      $region20: #{tpu_custom_call.1} parent=5 // pred_fallthru
        _
      %p216 = scmp.le.s32.totalorder 1, %s17
      %p217 = scmp.lt.s32.totalorder %s17, 3
      %p218 = pnand %p216, %p217
      %p219 = pneg %p218
      // Predicated region
      $region33: #{tpu_custom_call.1} parent=5 // pred_check
        _
      $region34: #{tpu_custom_call.1} parent=5 // pred_check_branch
        %221 = sbr.rel (%p218) target = $region36
      $region35: #{tpu_custom_call.1} parent=5 // pred_region
        %s222 = ssub.s32 %s17, 1
        // Predicated region
        $region37: #{tpu_custom_call.1} parent=35 // pred_check
          %p223 = pneg %p38
        $region38: #{tpu_custom_call.1} parent=35 // pred_check_branch
          %225 = sbr.rel (%p223) target = $region40
        $region39: #{tpu_custom_call.1} parent=35 // pred_region
          %226 = dma.done [#allocation3], 128
        $region40: #{tpu_custom_call.1} parent=35 // pred_fallthru
          _
        %s227 = sand.u32 %s22, 1
        %s228 = scalar_lea.sflag [#allocation6], %s227
        %s229 = sand.u32 %s51, 1
        %s230 = smul.addr %s229, 32
        %s231 = scalar_lea.vmem [#allocation5], %s230
        // Predicated region
        $region41: #{tpu_custom_call.1} parent=35 // pred_check
          %p232 = pneg %p64
        $region42: #{tpu_custom_call.1} parent=35 // pred_check_branch
          %234 = sbr.rel (%p232) target = $region44
        $region43: #{tpu_custom_call.1} parent=35 // pred_region
          %235 = dma.done %s228, 512
        $region44: #{tpu_custom_call.1} parent=35 // pred_fallthru
          _
        %s236 = sand.u32 %s22, 1
        %s237 = scalar_lea.sflag [#allocation6], %s236
        %s238 = sand.u32 %s77, 1
        %s239 = smul.addr %s238, 8
        %s240 = scalar_lea.vmem [#allocation7], %s239
        // Predicated region
        $region45: #{tpu_custom_call.1} parent=35 // pred_check
          %p241 = pneg %p90
        $region46: #{tpu_custom_call.1} parent=35 // pred_check_branch
          %243 = sbr.rel (%p241) target = $region48
        $region47: #{tpu_custom_call.1} parent=35 // pred_region
          %244 = dma.done %s237, 128
        $region48: #{tpu_custom_call.1} parent=35 // pred_fallthru
          _
        %p245 = pneg %p38
        %p246 = pneg %p35
        %s247 = sand.u32 %s22, 1
        %s248 = scalar_lea.sflag [#allocation6], %s247
        %s249 = sand.u32 %s51, 1
        %s250 = smul.addr %s249, 32
        %s251 = scalar_lea.vmem [#allocation5], %s250
        %p252 = pneg %p64
        %p253 = pneg %p61
        %s254 = sand.u32 %s22, 1
        %s255 = scalar_lea.sflag [#allocation6], %s254
        %s256 = sand.u32 %s77, 1
        %s257 = smul.addr %s256, 8
        %s258 = scalar_lea.vmem [#allocation7], %s257
        %p259 = pneg %p90
        %p260 = pneg %p87
        %p261 = scmp.lt.s32.totalorder %s22, 1
        %s262 = scalar_select %p261, %s22, 1
        %s263 = scalar_lea.vmem %s3, %s262
        %p264 = pneg %p116
        %p265 = pneg %p113
        %p266 = pneg %p142
        %p267 = pneg %p139
        %s268 = sand.u32 %s129, 1
        %s269 = scalar_lea.sflag [#allocation4], %s268
        %s270 = sand.u32 %s129, 1
        %s271 = smul.addr %s270, 8
        %s272 = scalar_lea.vmem [#allocation8], %s271
        %p273 = scmp.lt.s32.totalorder %s22, 1
        %s274 = scalar_select %p273, %s22, 1
        %s275 = scalar_lea.vmem %s3, %s274
        %v278 = vld [vmem:[%s240] sm:$0xff]
        %vm279 = vnez %v278
        %v280 = vld [vmem:[%s231] sm:$0xff]
        %v281 = vld [vmem:[%s231 + $0x8] sm:$0xff]
        %v282 = vld [vmem:[%s231 + $0x10] sm:$0xff]
        %v283 = vld [vmem:[%s231 + $0x18] sm:$0xff]
        %v284 = vld [vmem:[%s275] sm:$0x1]
        %v286 = vlaneseq
        %v287 = vshrl.u32 %v286, 7
        %v288 = vsub.s32 0, %v287
        %v289 = vrot.slane %v284, %v288
        %v291 = vmul.f32 %v280, %v289
        %v292 = vmul.f32 %v281, %v289
        %v293 = vmul.f32 %v282, %v289
        %v294 = vmul.f32 %v283, %v289
        %v295 = vsel %vm279, 16843009, 0
        %v296 = vunpack.c.0.s8 %v295
        %v297 = vunpack.c.1.s8 %v295
        %v298 = vunpack.c.2.s8 %v295
        %v299 = vunpack.c.3.s8 %v295
        %v300 = vpack.c.b16 %v296, %v296
        %v301 = vpack.c.b8 %v300, %v300
        %v302 = vpack.c.b16 %v297, %v297
        %v303 = vpack.c.b8 %v302, %v302
        %v304 = vpack.c.b16 %v298, %v298
        %v305 = vpack.c.b8 %v304, %v304
        %v306 = vpack.c.b16 %v299, %v299
        %v307 = vpack.c.b8 %v306, %v306
        %vm308 = vnez %v301
        %vm309 = vnez %v303
        %vm310 = vnez %v305
        %vm311 = vnez %v307
        %v312 = vsel %vm308, 16843009, 0
        %v313 = vsel %vm309, 16843009, 0
        %v314 = vsel %vm310, 16843009, 0
        %v315 = vsel %vm311, 16843009, 0
        %v316 = vunpack.c.0.s8 %v312
        %v317 = vunpack.c.0.s8 %v313
        %v318 = vunpack.c.0.s8 %v314
        %v319 = vunpack.c.0.s8 %v315
        %vm320 = vcmp.ne.s32.totalorder %v316, 0
        %vm321 = vcmp.ne.s32.totalorder %v317, 0
        %vm322 = vcmp.ne.s32.totalorder %v318, 0
        %vm323 = vcmp.ne.s32.totalorder %v319, 0
        %v324 = vsel %vm320, %v291, 0.0
        %v325 = vsel %vm321, %v292, 0.0
        %v326 = vsel %vm322, %v293, 0.0
        %v327 = vsel %vm323, %v294, 0.0
        %v328 = vld [vmem:[#allocation2] sm:$0xff]
        %vm329 = vcmask 261120
        %v331 = vsel %vm329, %v328, 0
        %333 = vmatprep.subr.mxu0 0.0
        %334 = vmatpush1.msra.mxu0 %v324
        %335 = vmatprep.subr.mxu0 0.0
        %336 = vmatpush1.msra.mxu0 %v325
        %337 = vmatprep.subr.mxu0 0.0
        %338 = vmatpush1.msra.mxu0 %v326
        %339 = vmatprep.subr.mxu0 0.0
        %340 = vmatpush1.msra.mxu0 %v327
        %341 = vmatprep.subr.mxu0 0.0
        %342 = vmatpush1.msra.mxu0 0.0
        %343 = vmatprep.subr.mxu0 0.0
        %344 = vmatpush1.msra.mxu0 0.0
        %345 = vmatprep.subr.mxu0 0.0
        %346 = vmatpush1.msra.mxu0 0.0
        %347 = vmatprep.subr.mxu0 0.0
        %348 = vmatpush1.msra.mxu0 0.0
        %349 = vmatprep.subr.mxu0 0.0
        %350 = vmatpush1.msra.mxu0 0.0
        %351 = vmatprep.subr.mxu0 0.0
        %352 = vmatpush1.msra.mxu0 0.0
        %353 = vmatprep.subr.mxu0 0.0
        %354 = vmatpush1.msra.mxu0 0.0
        %355 = vmatprep.subr.mxu0 0.0
        %356 = vmatpush1.msra.mxu0 0.0
        %357 = vmatprep.subr.mxu0 0.0
        %358 = vmatpush1.msra.mxu0 0.0
        %359 = vmatprep.subr.mxu0 0.0
        %360 = vmatpush1.msra.mxu0 0.0
        %361 = vmatprep.subr.mxu0 0.0
        %362 = vmatpush1.msra.mxu0 0.0
        %363 = vmatprep.subr.mxu0 0.0
        %364 = vmatpush1.msra.mxu0 0.0
        %365 = vmatprep.subr.mxu0 0.0
        %366 = vmatpush1.msra.mxu0 0.0
        %367 = vmatprep.subr.mxu0 0.0
        %368 = vmatpush1.msra.mxu0 0.0
        %369 = vmatprep.subr.mxu0 0.0
        %370 = vmatpush1.msra.mxu0 0.0
        %371 = vmatprep.subr.mxu0 0.0
        %372 = vmatpush1.msra.mxu0 0.0
        %373 = vmatprep.subr.mxu0 0.0
        %374 = vmatpush1.msra.mxu0 0.0
        %375 = vmatprep.subr.mxu0 0.0
        %376 = vmatpush1.msra.mxu0 0.0
        %377 = vmatprep.subr.mxu0 0.0
        %378 = vmatpush1.msra.mxu0 0.0
        %379 = vmatprep.subr.mxu0 0.0
        %380 = vmatpush1.msra.mxu0 0.0
        %381 = vmatprep.subr.mxu0 0.0
        %382 = vmatpush1.msra.mxu0 0.0
        %383 = vmatprep.subr.mxu0 0.0
        %384 = vmatpush1.msra.mxu0 0.0
        %385 = vmatprep.subr.mxu0 0.0
        %386 = vmatpush1.msra.mxu0 0.0
        %387 = vmatprep.subr.mxu0 0.0
        %388 = vmatpush1.msra.mxu0 0.0
        %389 = vmatprep.subr.mxu0 0.0
        %390 = vmatpush1.msra.mxu0 0.0
        %391 = vmatprep.subr.mxu0 0.0
        %392 = vmatpush1.msra.mxu0 0.0
        %393 = vmatprep.subr.mxu0 0.0
        %394 = vmatpush1.msra.mxu0 0.0
        %395 = vmatprep.subr.mxu0 0.0
        %396 = vmatpush1.msra.mxu0 0.0
        %397 = vmatprep.mubr.f32.mxu0 0.0
        %398 = vmatmul.mubr.f32.gmra.mrb[0].mxu0 %v331
        %v399 = vpop.f32.mrb[0].mxu0
        %v400 = vadd.f32 0.0, %v399
        %v401 = vpop.f32.mrb[0].mxu0
        %402 = vdwg.mxu0
        %403 = vst [vmem:[%s272] sm:$0xff] %v400
        %s404 = sand.u32 %s129, 1
        %s405 = scalar_lea.sflag [#allocation4], %s404
        %s406 = sand.u32 %s129, 1
        %s407 = smul.addr %s406, 8
        %s408 = scalar_lea.vmem [#allocation8], %s407
        // Predicated region
        $region49: #{tpu_custom_call.1} parent=35 // pred_check
          %p409 = pneg %p139
        $region50: #{tpu_custom_call.1} parent=35 // pred_check_branch
          %411 = sbr.rel (%p409) target = $region52
        $region51: #{tpu_custom_call.1} parent=35 // pred_region
          %s413 = ssub.s32 128, 128
          %414 = vsyncadd %s405, %s413
          %s415 = smul.addr %s22, 128
          %s416 = scalar_lea.hbm %s4, %s415
          %s418 = sshll.u32 %s408, 4
          %s419 = int_to_ptr.vmem [resolvable:$true] %s418
          %421 = dma.vmem_to_hbm [thread:$0]  %s419, 128, %s416, %s405
        $region52: #{tpu_custom_call.1} parent=35 // pred_fallthru
          _
      $region36: #{tpu_custom_call.1} parent=5 // pred_fallthru
        _
      %p422 = scmp.le.s32.totalorder 2, %s17
      // Predicated region
      $region53: #{tpu_custom_call.1} parent=5 // pred_check
        %p423 = pneg %p422
      $region54: #{tpu_custom_call.1} parent=5 // pred_check_branch
        %425 = sbr.rel (%p423) target = $region56
      $region55: #{tpu_custom_call.1} parent=5 // pred_region
        %s426 = ssub.s32 %s17, 2
        // Predicated region
        $region57: #{tpu_custom_call.1} parent=55 // pred_check
          %p427 = pneg %p145
        $region58: #{tpu_custom_call.1} parent=55 // pred_check_branch
          %429 = sbr.rel (%p427) target = $region60
        $region59: #{tpu_custom_call.1} parent=55 // pred_region
          %s430 = sand.u32 %s130, 1
          %s431 = scalar_lea.sflag [#allocation4], %s430
          %s432 = sand.u32 %s130, 1
          %s433 = smul.addr %s432, 8
          %s434 = scalar_lea.vmem [#allocation8], %s433
          %435 = dma.done %s431, 128
        $region60: #{tpu_custom_call.1} parent=55 // pred_fallthru
          _
      $region56: #{tpu_custom_call.1} parent=5 // pred_fallthru
        _
    $region6: #{tpu_custom_call.1} parent=1 // loop_footer
      %s21 = sadd.s32 1, %s17
    $region7: #{tpu_custom_call.1} parent=1 // loop_footer_branch
      %16 = sbr.rel target = $region3
    $region8: #{tpu_custom_call.1} parent=1 // loop_exit
      _
    %436 = vsyncpa [#allocation3], 1
    %s437 = scalar_lea.sflag [#allocation3], 1
    %438 = vsyncpa %s437, 1
    %439 = vsyncpa [#allocation6], 1
    %s440 = scalar_lea.sflag [#allocation6], 1
    %441 = vsyncpa %s440, 1
    %442 = vsyncpa [#allocation4], 1
    %s443 = scalar_lea.sflag [#allocation4], 1
    %444 = vsyncpa %s443, 1

</llo_original>
